<compile_context>
chip_gen: v6e
topology: v6e:2x2x1
jax: 0.10.0
libtpu: 0.0.40
codegen_flags: <defaults>
</compile_context>

<pallas_src>
import functools
import math

import jax
import jax.numpy as jnp
from jax import lax
from jax.experimental import pallas as pl
from jax.experimental.pallas import tpu as pltpu


def _linear_clamp_kernel(x_ref, w_ref, b_ref, o_ref, *, min_value, max_value):
    # x_ref: (TR, IN)   w_ref: (OUT, IN)   b_ref: (1, OUT)   o_ref: (TR, OUT)
    # Contract the IN axis of both operands (== x @ W^T) so no transposed copy
    # of x or y is ever materialized in HBM.  M=TR is large; the tiny K=5 /
    # N=10 MXU underutilization is irrelevant -- the kernel is HBM/DMA bound.
    y = lax.dot_general(
        x_ref[...], w_ref[...],
        dimension_numbers=(((1,), (1,)), ((), ())),
        preferred_element_type=jnp.float32,
    )
    y = y + b_ref[...]                 # bias broadcast across rows
    y = jnp.maximum(y, min_value)      # clamp_min
    y = jnp.minimum(y, max_value)      # clamp_max
    o_ref[...] = y.astype(o_ref.dtype)


def _round_up(v, m):
    return ((v + m - 1) // m) * m


def linear_clamp(x, weight, bias, min_value=0.0, max_value=1.0,
                 *, use_pallas=None, row_tile=16384):
    """clip(x @ W^T + b, min, max).  x: (..., IN), weight: (OUT, IN), bias: (OUT,)."""
    out_features, in_features = weight.shape
    assert x.shape[-1] == in_features

    lead_shape = x.shape[:-1]
    rows = 1
    for d in lead_shape:
        rows *= int(d)
    x2d = x.reshape(rows, in_features)

    if use_pallas is None:
        # Break-even vs. the fused XLA path (which also reads x once / writes y
        # once) is dominated by custom-call overhead; keep a conservative gate.
        use_pallas = rows >= 4096
    if not use_pallas:
        y = jnp.clip(x2d @ weight.T + bias[None, :], min_value, max_value)
        return y.reshape(*lead_shape, out_features)

    # ---------- Pallas path: natural layout, row-tiled, double-buffered ----------
    b2d = bias.reshape(1, out_features)

    if rows <= 1024:
        # Single full block; block dim == full array dim, so no (8,128) issue.
        tr = rows
    else:
        # Target >= 8 blocks (pipelining + dual-TC sharding on v7x), capped by
        # row_tile; sublane (second-to-last) block dim must be a multiple of 8.
        tr = min(int(row_tile), _round_up(pl.cdiv(rows, 8), 8))
        tr = max(8, (tr // 8) * 8)
    grid = (pl.cdiv(rows, tr),)

    # VMEM budget: x and out tiles pad their last dim to 128 lanes, each
    # double-buffered -> ~4 * tr * 128 * 4 bytes, plus tiny W/bias.
    vmem_bytes = 4 * tr * 128 * 4 + (1 << 20)
    vmem_bytes = int(min(max(vmem_bytes, 32 << 20), 48 << 20))

    # min/max are baked in as static floats (module constants).
    # TODO(synk): traced min/max would need SMEM scalar inputs instead.
    kernel = functools.partial(
        _linear_clamp_kernel,
        min_value=float(min_value),
        max_value=float(max_value),
    )

    itemsize = jnp.dtype(x.dtype).itemsize
    out2d = pl.pallas_call(
        kernel,
        out_shape=jax.ShapeDtypeStruct((rows, out_features), x.dtype),
        grid=grid,
        in_specs=[
            pl.BlockSpec((tr, in_features), lambda i: (i, 0)),              # x tile
            pl.BlockSpec((out_features, in_features), lambda i: (0, 0)),    # W resident
            pl.BlockSpec((1, out_features), lambda i: (0, 0)),              # b resident
        ],
        out_specs=pl.BlockSpec((tr, out_features), lambda i: (i, 0)),       # y tile
        compiler_params=pltpu.CompilerParams(
            dimension_semantics=("parallel",),    # independent row tiles
            vmem_limit_bytes=vmem_bytes,
        ),
        cost_estimate=pl.CostEstimate(
            flops=2 * rows * in_features * out_features,
            transcendentals=0,
            bytes_accessed=rows * (in_features + out_features) * itemsize,
        ),
    )(x2d, weight, b2d)

    return out2d.reshape(*lead_shape, out_features)


if __name__ == "__main__":
    key = jax.random.PRNGKey(0)
    k_x, k_w, k_b, k_x2 = jax.random.split(key, 4)

    in_features, out_features = 5, 10
    # Deterministic "Linear(5, 10)" parameters (PyTorch-style uniform init).
    bound = 1.0 / math.sqrt(float(in_features))
    weight = jax.random.uniform(
        k_w, (out_features, in_features), jnp.float32, -bound, bound
    )
    bias = jax.random.uniform(k_b, (out_features,), jnp.float32, -bound, bound)

    def ref_fn(x):
        return jnp.clip(jnp.einsum("...i,oi->...o", x, weight) + bias, 0.0, 1.0)

    # 1) Small shape consistent with the forward pass (last dim must be IN=5).
    #    (the original script's x1=(10,5,1) would not pass nn.Linear(5,10).)
    x_small = jax.random.normal(k_x, (2, 8, in_features), jnp.float32)
    out_small = jax.block_until_ready(
        linear_clamp(x_small, weight, bias, 0.0, 1.0, use_pallas=True)
    )
    assert out_small.shape == (2, 8, out_features)
    assert jnp.allclose(out_small, ref_fn(x_small), atol=1e-5, rtol=1e-5)

    # 2) Multi-tile path (grid > 1, ragged last tile) with a small row tile.
    x_big = jax.random.normal(k_x2, (4000, in_features), jnp.float32)
    out_big = jax.block_until_ready(
        linear_clamp(x_big, weight, bias, 0.0, 1.0, use_pallas=True, row_tile=256)
    )
    assert out_big.shape == (4000, out_features)
    assert jnp.allclose(out_big, ref_fn(x_big), atol=1e-5, rtol=1e-5)

    print("KERNEL_OK")
</pallas_src>

<mosaic_0001>
module attributes {stable_mosaic.version = 11 : i64} {
  func.func @_linear_clamp_kernel(%arg0: i32, %arg1: memref<16x5xf32, #tpu.memory_space<vmem>>, %arg2: memref<10x5xf32, #tpu.memory_space<vmem>>, %arg3: memref<1x10xf32, #tpu.memory_space<vmem>>, %arg4: memref<16x10xf32, #tpu.memory_space<vmem>>) attributes {dimension_semantics = [#tpu.dimension_semantics<parallel>], iteration_bounds = array<i64: 1>, scalar_prefetch = 0 : i64, scratch_operands = 0 : i64, tpu.core_type = #tpu.core_type<tc>, window_params = [{transform_indices = @transform_0, window_bounds = array<i64: 16, 5>}, {pipeline_mode = #tpu.pipeline_mode<synchronous>, transform_indices = @transform_1, window_bounds = array<i64: 10, 5>}, {pipeline_mode = #tpu.pipeline_mode<synchronous>, transform_indices = @transform_2, window_bounds = array<i64: 1, 10>}, {transform_indices = @transform_3, window_bounds = array<i64: 16, 10>}]} {
    %c0 = arith.constant 0 : index
    %c0_0 = arith.constant 0 : index
    %0 = vector.load %arg1[%c0, %c0_0] : memref<16x5xf32, #tpu.memory_space<vmem>>, vector<16x5xf32>
    %c0_1 = arith.constant 0 : index
    %c0_2 = arith.constant 0 : index
    %1 = vector.load %arg2[%c0_1, %c0_2] : memref<10x5xf32, #tpu.memory_space<vmem>>, vector<10x5xf32>
    %cst = arith.constant dense<0.000000e+00> : vector<16x10xf32>
    %2 = tpu.matmul %0, %1, %cst {dimension_numbers = #tpu.dot_dimension_numbers<[1], [1], [0], [0], [0, 0, 1, 0], [], []>} : vector<16x5xf32>, vector<10x5xf32>, vector<16x10xf32> -> vector<16x10xf32>
    %c0_3 = arith.constant 0 : index
    %c0_4 = arith.constant 0 : index
    %3 = vector.load %arg3[%c0_3, %c0_4] : memref<1x10xf32, #tpu.memory_space<vmem>>, vector<1x10xf32>
    %4 = vector.broadcast %3 : vector<1x10xf32> to vector<16x10xf32>
    %5 = arith.addf %2, %4 : vector<16x10xf32>
    %cst_5 = arith.constant 0.000000e+00 : f32
    %6 = vector.broadcast %cst_5 : f32 to vector<16x10xf32>
    %7 = arith.maximumf %5, %6 : vector<16x10xf32>
    %cst_6 = arith.constant 1.000000e+00 : f32
    %8 = vector.broadcast %cst_6 : f32 to vector<16x10xf32>
    %9 = arith.minimumf %7, %8 : vector<16x10xf32>
    %c0_7 = arith.constant 0 : index
    %c0_8 = arith.constant 0 : index
    %10 = vector.load %arg4[%c0_7, %c0_8] : memref<16x10xf32, #tpu.memory_space<vmem>>, vector<16x10xf32>
    tpu.vector_store %arg4[%c0_7, %c0_8], %9 {strides = array<i32>} : memref<16x10xf32, #tpu.memory_space<vmem>>, vector<16x10xf32>,
    return
  }
  func.func @transform_0(%arg0: i32) -> (i32, i32) {
    %c0_i32 = arith.constant 0 : i32
    %c0_i32_0 = arith.constant 0 : i32
    return %arg0, %c0_i32 : i32, i32
  }
  func.func @transform_1(%arg0: i32) -> (i32, i32) {
    %c0_i32 = arith.constant 0 : i32
    %c0_i32_0 = arith.constant 0 : i32
    %c0_i32_1 = arith.constant 0 : i32
    return %c0_i32, %c0_i32_0 : i32, i32
  }
  func.func @transform_2(%arg0: i32) -> (i32, i32) {
    %c0_i32 = arith.constant 0 : i32
    %c0_i32_0 = arith.constant 0 : i32
    %c0_i32_1 = arith.constant 0 : i32
    return %c0_i32, %c0_i32_0 : i32, i32
  }
  func.func @transform_3(%arg0: i32) -> (i32, i32) {
    %c0_i32 = arith.constant 0 : i32
    %c0_i32_0 = arith.constant 0 : i32
    return %arg0, %c0_i32 : i32, i32
  }
}

</mosaic_0001>

<llo_original>
// kernel: tpu_custom_call.1
$region0: #{tpu_custom_call.1}
  #allocation0 [shape = 'u32[]', space=smem, size = 0x4, offset = 0x4, fixed_abs, tag = 'smem constant byte address 0x4 - core index']
  #allocation1 [shape = 'u32[144,128]{1,0:T(1,128)}', space=vmem, size = 0x12000, scoped, tag = 'internal scratch']
  %s0 = inlined_call_operand.vmem [shape: f32[16,5], index: 0, kind: input, shape index: {}]
  %s1 = inlined_call_operand.vmem [shape: f32[10,5], index: 1, kind: input, shape index: {}]
  %s2 = inlined_call_operand.vmem [shape: f32[1,10], index: 2, kind: input, shape index: {}]
  %s3 = inlined_call_operand.hbm [shape: f32[16,10], index: 3, kind: output, shape index: {}]
  %s4 = sld [smem:[#allocation0]]
  $region22: #{tpu_custom_call.1} parent=0
    _
  %s6 = ssub.s32 1, %s4
  %s7 = scalar_select 0, %s6, %s4
  $region1: #{tpu_custom_call.1} parent=0
    #allocation2 [shape = 'u8[8192]{0}', space=vmem, size = 0x2000, scoped, tag = 'output window, operand 0, single buffered']
    #allocation3 [shape = 's32[1]{0}', space=sflag, size = 0x4, scoped, tag = 'scoped memory for tpu_custom_call.1']
    %8 = vsyncpa [#allocation3], 0
    // Predicated region
    $region2: #{tpu_custom_call.1} parent=1 // pred_check
      _
    $region3: #{tpu_custom_call.1} parent=1 // pred_check_branch
      %10 = sbr.rel (0) target = $region5
    $region4: #{tpu_custom_call.1} parent=1 // pred_region
      _
    $region5: #{tpu_custom_call.1} parent=1 // pred_fallthru
      _
    // Predicated region
    $region6: #{tpu_custom_call.1} parent=1 // pred_check
      _
    $region7: #{tpu_custom_call.1} parent=1 // pred_check_branch
      %12 = sbr.rel (0) target = $region9
    $region8: #{tpu_custom_call.1} parent=1 // pred_region
      _
    $region9: #{tpu_custom_call.1} parent=1 // pred_fallthru
      _
    // Predicated region
    $region10: #{tpu_custom_call.1} parent=1 // pred_check
      _
    $region11: #{tpu_custom_call.1} parent=1 // pred_check_branch
      %14 = sbr.rel (0) target = $region13
    $region12: #{tpu_custom_call.1} parent=1 // pred_region
      _
    $region13: #{tpu_custom_call.1} parent=1 // pred_fallthru
      _
    %v15 = vld [vmem:[%s0] sm:$0xff]
    %v16 = vld [vmem:[%s0 + $0x8] sm:$0xff]
    %v17 = vld [vmem:[%s1] sm:$0xff]
    %v18 = vld [vmem:[%s1 + $0x8] sm:$0x3]
    %v19 = vld [vmem:[%s2] sm:$0x1]
    %v21 = vlaneseq
    %v22 = vshrl.u32 %v21, 7
    %v23 = vsub.s32 0, %v22
    %v24 = vrot.slane %v19, %v23
    %vm26 = vcmask 39936
    %v28 = vsel %vm26, %v15, 0
    %v31 = vsel %vm26, %v16, 0
    %v34 = vsel %vm26, %v17, 0
    %v37 = vsel %vm26, %v18, 0
    %39 = vmatprep.subr.mxu0 0.0
    %40 = vmatpush1.xpose.msra.mxu0 0.0
    %41 = vmatprep.subr.mxu0 0.0
    %42 = vmatpush1.xpose.msra.mxu0 0.0
    %43 = vmatprep.subr.mxu0 0.0
    %44 = vmatpush1.xpose.msra.mxu0 0.0
    %45 = vmatprep.subr.mxu0 0.0
    %46 = vmatpush1.xpose.msra.mxu0 0.0
    %47 = vmatprep.subr.mxu0 0.0
    %48 = vmatpush1.xpose.msra.mxu0 0.0
    %49 = vmatprep.subr.mxu0 0.0
    %50 = vmatpush1.xpose.msra.mxu0 0.0
    %51 = vmatprep.subr.mxu0 0.0
    %52 = vmatpush1.xpose.msra.mxu0 0.0
    %53 = vmatprep.subr.mxu0 0.0
    %54 = vmatpush1.xpose.msra.mxu0 0.0
    %55 = vmatprep.subr.mxu0 0.0
    %56 = vmatpush1.xpose.msra.mxu0 0.0
    %57 = vmatprep.subr.mxu0 0.0
    %58 = vmatpush1.xpose.msra.mxu0 0.0
    %59 = vmatprep.subr.mxu0 0.0
    %60 = vmatpush1.xpose.msra.mxu0 0.0
    %61 = vmatprep.subr.mxu0 0.0
    %62 = vmatpush1.xpose.msra.mxu0 0.0
    %63 = vmatprep.subr.mxu0 0.0
    %64 = vmatpush1.xpose.msra.mxu0 0.0
    %65 = vmatprep.subr.mxu0 0.0
    %66 = vmatpush1.xpose.msra.mxu0 0.0
    %67 = vmatprep.subr.mxu0 0.0
    %68 = vmatpush1.xpose.msra.mxu0 %v37
    %69 = vmatprep.subr.mxu0 0.0
    %70 = vmatpush1.xpose.msra.mxu0 %v34
    %71 = vmatprep.subr.mxu0 0.0
    %72 = vmatpush2.xpose.msra.mxu0 0.0
    %73 = vmatprep.subr.mxu0 0.0
    %74 = vmatpush2.xpose.msra.mxu0 0.0
    %75 = vmatprep.subr.mxu0 0.0
    %76 = vmatpush2.xpose.msra.mxu0 0.0
    %77 = vmatprep.subr.mxu0 0.0
    %78 = vmatpush2.xpose.msra.mxu0 0.0
    %79 = vmatprep.subr.mxu0 0.0
    %80 = vmatpush2.xpose.msra.mxu0 0.0
    %81 = vmatprep.subr.mxu0 0.0
    %82 = vmatpush2.xpose.msra.mxu0 0.0
    %83 = vmatprep.subr.mxu0 0.0
    %84 = vmatpush2.xpose.msra.mxu0 0.0
    %85 = vmatprep.subr.mxu0 0.0
    %86 = vmatpush2.xpose.msra.mxu0 0.0
    %87 = vmatprep.subr.mxu0 0.0
    %88 = vmatpush2.xpose.msra.mxu0 0.0
    %89 = vmatprep.subr.mxu0 0.0
    %90 = vmatpush2.xpose.msra.mxu0 0.0
    %91 = vmatprep.subr.mxu0 0.0
    %92 = vmatpush2.xpose.msra.mxu0 0.0
    %93 = vmatprep.subr.mxu0 0.0
    %94 = vmatpush2.xpose.msra.mxu0 0.0
    %95 = vmatprep.subr.mxu0 0.0
    %96 = vmatpush2.xpose.msra.mxu0 0.0
    %97 = vmatprep.subr.mxu0 0.0
    %98 = vmatpush2.xpose.msra.mxu0 0.0
    %99 = vmatprep.subr.mxu0 0.0
    %100 = vmatpush2.xpose.msra.mxu0 0.0
    %101 = vmatprep.subr.mxu0 0.0
    %102 = vmatpush2.xpose.msra.mxu0 0.0
    %103 = vmatprep.mubr.f32.mxu0 0.0
    %104 = vmatmul.mubr.f32.gmra.mxu0 %v28
    %v105 = vpop.f32.mrf.mxu0
    %v106 = vadd.f32 %v24, %v105
    %v107 = vpop.f32.mrf.mxu0
    %108 = vmatprep.mubr.f32.mxu0 0.0
    %109 = vmatmul.mubr.f32.gmra.mxu0 %v31
    %v110 = vpop.f32.mrf.mxu0
    %v111 = vadd.f32 %v24, %v110
    %v112 = vpop.f32.mrf.mxu0
    %113 = vdwg.mxu0
    %v114 = vmax.f32 %v106, 0.0
    %v115 = vmax.f32 %v111, 0.0
    %v116 = vmin.f32 %v114, 1.0
    %v117 = vmin.f32 %v115, 1.0
    %vm118 = vcmask 80896
    %119 = vst.msk [vmem:[#allocation2] sm:$0xff] %vm118, %v116
    %120 = vst.msk [vmem:[#allocation2 + $0x8] sm:$0xff] %vm118, %v117
    // Predicated region
    $region14: #{tpu_custom_call.1} parent=1 // pred_check
      _
    $region15: #{tpu_custom_call.1} parent=1 // pred_check_branch
      %122 = sbr.rel (0) target = $region17
    $region16: #{tpu_custom_call.1} parent=1 // pred_region
      %s124 = ssub.s32 256, 256
      %125 = vsyncadd [#allocation3], %s124
      %s126 = sshll.u32 [#allocation2], 4
      %s127 = int_to_ptr.vmem [resolvable:$true] %s126
      %132 = dma.vmem_to_hbm [thread:$0]  %s127, 256, %s3, [#allocation3], 128, 128, 8
    $region17: #{tpu_custom_call.1} parent=1 // pred_fallthru
      _
    // Predicated region
    $region18: #{tpu_custom_call.1} parent=1 // pred_check
      _
    $region19: #{tpu_custom_call.1} parent=1 // pred_check_branch
      %134 = sbr.rel (0) target = $region21
    $region20: #{tpu_custom_call.1} parent=1 // pred_region
      %135 = dma.done [#allocation3], 256
    $region21: #{tpu_custom_call.1} parent=1 // pred_fallthru
      _
    %136 = vsyncpa [#allocation3], 1

</llo_original>
